<compile_context>
chip_gen: v6e
topology: v6e:2x2x1
jax: 0.10.0
libtpu: 0.0.40
codegen_flags: <defaults>
</compile_context>

<pallas_src>
import functools

import jax
import jax.numpy as jnp
from jax.experimental import pallas as pl
from jax.experimental.pallas import tpu as pltpu

LANE = 128      # vreg lane width
SUBLANE = 8     # f32 sublane count


def _charbonnier_kernel(x_ref, y_ref, o_ref, *, eps_sq, total, nblocks,
                        has_tail):
    """Accumulate sum(sqrt((x-y)^2 + eps^2)) of one tile into o_ref.

    o_ref is a (1, 8, 128) f32 block resident across the inner (arbitrary)
    grid axis and acts as the accumulator; the wrapper does the final
    cross-lane reduction and the mean.
    """
    k = pl.program_id(1)

    @pl.when(k == 0)
    def _init():
        o_ref[...] = jnp.zeros_like(o_ref)

    x = x_ref[...].astype(jnp.float32)
    y = y_ref[...].astype(jnp.float32)
    diff = x - y
    err = jnp.sqrt(diff * diff + eps_sq)

    block_rows = x_ref.shape[0]

    def _fold(v):
        # (block_rows, 128) -> (1, 8, 128): vreg-wise VALU adds only (the
        # trailing (8, 128) dims line up with vreg tiles, so the reshape is
        # free and no cross-lane/XLU work is needed here).
        return v.reshape(1, block_rows // SUBLANE, SUBLANE, LANE).sum(axis=1)

    if not has_tail:
        # Input divides evenly into blocks and there are no duplicate slots:
        # emit only the fast path (no iota/compare/select at all).
        o_ref[...] += _fold(err)
    else:
        p = pl.program_id(0)
        # Global block index along the flattened row axis.  Slots with
        # gb >= nblocks are duplicates of the last block (index_map clamps
        # them); their contribution is fully masked out below.
        gb = p * pl.num_programs(1) + k

        @pl.when(gb < nblocks - 1)
        def _full_block():
            # Fast path: every element of this tile is in bounds.
            o_ref[...] += _fold(err)

        @pl.when(gb >= nblocks - 1)
        def _tail_block():
            # Only the last real block (and duplicate slots) can contain lane
            # padding or out-of-bounds rows; mask them so they contribute 0.
            # Row/col decomposition avoids a flat-index multiply and any
            # int32 overflow (valid for total < 2**38 elements).
            row = jax.lax.broadcasted_iota(jnp.int32, err.shape, 0)
            col = jax.lax.broadcasted_iota(jnp.int32, err.shape, 1)
            row_global = gb * block_rows + row
            full_rows = total // LANE          # Python int, baked in
            rem = total % LANE
            mask = (row_global < full_rows) | (
                (row_global == full_rows) & (col < rem))
            o_ref[...] += _fold(jnp.where(mask, err, 0.0))


def _round_up(a, b):
    return pl.cdiv(a, b) * b


def _chip_profile():
    """(num_tensorcores, scoped_vmem_default_bytes, vmem_cap_bytes, max_block_rows)."""
    kind = ""
    try:
        kind = jax.devices()[0].device_kind.lower()
    except Exception:
        pass

    vmem_cap = None
    try:
        vmem_cap = int(getattr(pltpu.get_tpu_info(), "vmem_capacity_bytes"))
    except Exception:
        vmem_cap = None

    if "v5 lite" in kind or "v5e" in kind or "v5lite" in kind:
        # 1 TC/chip, 16 MiB scoped default, 128 MiB physical VMEM.
        return 1, 16 << 20, vmem_cap or (128 << 20), 8192
    if "v6" in kind:
        # 1 TC/chip, 32 MiB scoped default, 128 MiB physical VMEM.
        return 1, 32 << 20, vmem_cap or (128 << 20), 8192
    if "v7" in kind:
        # 2 TC/chip, 32 MiB scoped default, 64 MiB physical VMEM per TC.
        return 2, 32 << 20, vmem_cap or (64 << 20), 4096
    # Unknown generation: conservative single-core defaults.
    return 1, 16 << 20, vmem_cap or (64 << 20), 4096


def charbonnier_loss(x, y, *, loss_weight=1.0, eps=1e-3, block_rows=4096,
                     num_parallel=None):
    assert x.shape == y.shape, "X and Y must have the same shape"
    total = int(x.size)

    num_cores, scoped_default, vmem_cap, br_cap = _chip_profile()

    x_flat = x.reshape(-1)
    y_flat = y.reshape(-1)

    # Pad only to the lane width (with an 8-row floor for tiny inputs).
    # For typical shapes this is a no-op, so no extra HBM copy of X / Y.
    padded = max(_round_up(total, LANE), SUBLANE * LANE)
    pad = padded - total
    if pad:
        x_flat = jnp.pad(x_flat, (0, pad))
        y_flat = jnp.pad(y_flat, (0, pad))

    rows = padded // LANE                      # >= 8
    x2d = x_flat.reshape(rows, LANE)
    y2d = y_flat.reshape(rows, LANE)

    # Tile height: as large as requested, multiple of 8, capped per chip
    # generation, never taller than the array (the last block may still be
    # partial; the kernel masks it).
    br = max(SUBLANE, (min(int(block_rows), rows, br_cap) // SUBLANE) * SUBLANE)
    nblocks = pl.cdiv(rows, br)

    # Leading "parallel" axis: extent > 1 only on multi-TensorCore chips
    # (v7x), so single-TC v5e/v6e never pay for duplicate clamped-block DMAs.
    # TODO(synk): verify on v7x via xprof that plain "parallel" semantics
    # actually shards this axis across both TensorCores; if not, switch it to
    # pltpu.CORE_PARALLEL.
    want_parallel = num_cores if num_parallel is None else int(num_parallel)
    p_dim = max(1, min(want_parallel, nblocks))
    inner = pl.cdiv(nblocks, p_dim)

    # Tail handling is only compiled in when it can actually trigger.
    has_tail = (pad != 0) or (rows % br != 0) or (p_dim * inner != nblocks)

    def in_map(p, k):
        # Clamp trailing duplicate slots onto the last real block; their
        # contribution is masked to zero inside the kernel.
        return (jnp.minimum(p * inner + k, nblocks - 1), 0)

    kernel = functools.partial(
        _charbonnier_kernel,
        eps_sq=float(eps) * float(eps),
        total=total,
        nblocks=nblocks,
        has_tail=has_tail,
    )

    # 2 inputs x 2 pipeline buffers x tile, plus the small resident outputs.
    vmem_need = (2 * 2 * br * LANE * 4
                 + 2 * p_dim * SUBLANE * LANE * 4
                 + (2 << 20))
    cparams = dict(dimension_semantics=("parallel", "arbitrary"))
    if vmem_need > scoped_default:
        # Only raise past the generation's scoped-VMEM default, and never
        # claim more than ~5/8 of physical VMEM (<= 40 MiB on v7x).
        ceiling = min(48 << 20, (vmem_cap * 5) // 8)
        cparams["vmem_limit_bytes"] = min(max(vmem_need, scoped_default),
                                          ceiling)

    partial_sums = pl.pallas_call(
        kernel,
        out_shape=jax.ShapeDtypeStruct((p_dim, SUBLANE, LANE), jnp.float32),
        grid_spec=pltpu.PrefetchScalarGridSpec(
            num_scalar_prefetch=0,
            grid=(p_dim, inner),
            in_specs=[
                pl.BlockSpec((br, LANE), in_map),
                pl.BlockSpec((br, LANE), in_map),
            ],
            out_specs=pl.BlockSpec((1, SUBLANE, LANE), lambda p, k: (p, 0, 0)),
        ),
        compiler_params=pltpu.CompilerParams(**cparams),
    )(x2d, y2d)

    # Tiny final cross-lane reduction + mean in plain JAX.
    return loss_weight * (jnp.sum(partial_sums) / jnp.float32(total))


if __name__ == "__main__":
    key = jax.random.PRNGKey(0)
    kx, ky = jax.random.split(key)

    def ref_loss(X, Y, eps=1e-3):
        d = X - Y
        return jnp.mean(jnp.sqrt(d * d + eps * eps))

    # Small NCHW inputs, as the PyTorch module expects.  2048 elements =
    # 16 lane-aligned rows -> exercises the has_tail=False fast path.
    X = jax.random.normal(kx, (2, 4, 16, 16), dtype=jnp.float32)
    Y = jax.random.normal(ky, (2, 4, 16, 16), dtype=jnp.float32)
    loss = charbonnier_loss(X, Y)
    jax.block_until_ready(loss)
    assert jnp.allclose(loss, ref_loss(X, Y), rtol=1e-5, atol=1e-6), (
        loss, ref_loss(X, Y))

    # Odd-sized input: exercises the lane-pad path, several grid steps and
    # the masked tail block (auto-detected core parallelism).
    kx2, ky2 = jax.random.split(ky)
    X2 = jax.random.normal(kx2, (2, 3, 37, 53), dtype=jnp.float32)
    Y2 = jax.random.normal(ky2, (2, 3, 37, 53), dtype=jnp.float32)
    loss2 = charbonnier_loss(X2, Y2, block_rows=16)
    jax.block_until_ready(loss2)
    assert jnp.allclose(loss2, ref_loss(X2, Y2), rtol=1e-5, atol=1e-6), (
        loss2, ref_loss(X2, Y2))

    # Forced 2-way leading axis with an odd block count: exercises the
    # clamped duplicate slot (fully masked) plus the partial last block.
    loss3 = charbonnier_loss(X2, Y2, block_rows=40, num_parallel=2)
    jax.block_until_ready(loss3)
    assert jnp.allclose(loss3, ref_loss(X2, Y2), rtol=1e-5, atol=1e-6), (
        loss3, ref_loss(X2, Y2))

    print("KERNEL_OK")
</pallas_src>

<mosaic_0001>
module attributes {stable_mosaic.version = 11 : i64} {
  func.func @_charbonnier_kernel(%arg0: i32, %arg1: i32, %arg2: memref<16x128xf32, #tpu.memory_space<vmem>>, %arg3: memref<16x128xf32, #tpu.memory_space<vmem>>, %arg4: memref<1x8x128xf32, #tpu.memory_space<vmem>>) attributes {dimension_semantics = [#tpu.dimension_semantics<parallel>, #tpu.dimension_semantics<arbitrary>], iteration_bounds = array<i64: 1, 1>, scalar_prefetch = 0 : i64, scratch_operands = 0 : i64, tpu.core_type = #tpu.core_type<tc>, window_params = [{transform_indices = @transform_0, window_bounds = array<i64: 16, 128>}, {transform_indices = @transform_1, window_bounds = array<i64: 16, 128>}, {transform_indices = @transform_2, window_bounds = array<i64: 1, 8, 128>}]} {
    %c0_i32 = arith.constant 0 : i32
    %0 = arith.cmpi eq, %arg1, %c0_i32 : i32
    %1 = arith.extui %0 : i1 to i32
    %c0_i32_0 = arith.constant 0 : i32
    %2 = arith.cmpi ne, %1, %c0_i32_0 : i32
    scf.if %2 {
      %cst_11 = arith.constant 0.000000e+00 : f32
      %15 = vector.broadcast %cst_11 : f32 to vector<1x8x128xf32>
      %c0_12 = arith.constant 0 : index
      %c0_13 = arith.constant 0 : index
      %c0_14 = arith.constant 0 : index
      %16 = vector.load %arg4[%c0_12, %c0_13, %c0_14] : memref<1x8x128xf32, #tpu.memory_space<vmem>>, vector<1x8x128xf32>
      tpu.vector_store %arg4[%c0_12, %c0_13, %c0_14], %15 {strides = array<i32>} : memref<1x8x128xf32, #tpu.memory_space<vmem>>, vector<1x8x128xf32>,
    } else {
    }
    %c0 = arith.constant 0 : index
    %c0_1 = arith.constant 0 : index
    %3 = vector.load %arg2[%c0, %c0_1] : memref<16x128xf32, #tpu.memory_space<vmem>>, vector<16x128xf32>
    %c0_2 = arith.constant 0 : index
    %c0_3 = arith.constant 0 : index
    %4 = vector.load %arg3[%c0_2, %c0_3] : memref<16x128xf32, #tpu.memory_space<vmem>>, vector<16x128xf32>
    %5 = arith.subf %3, %4 : vector<16x128xf32>
    %6 = arith.mulf %5, %5 : vector<16x128xf32>
    %cst = arith.constant 9.99999997E-7 : f32
    %7 = vector.broadcast %cst : f32 to vector<16x128xf32>
    %8 = arith.addf %6, %7 : vector<16x128xf32>
    %9 = math.sqrt %8 : vector<16x128xf32>
    %c0_4 = arith.constant 0 : index
    %c0_5 = arith.constant 0 : index
    %c0_6 = arith.constant 0 : index
    %10 = vector.load %arg4[%c0_4, %c0_5, %c0_6] : memref<1x8x128xf32, #tpu.memory_space<vmem>>, vector<1x8x128xf32>
    %11 = vector.shape_cast %9 : vector<16x128xf32> to vector<1x2x8x128xf32>
    %cst_7 = arith.constant dense<0.000000e+00> : vector<1x8x128xf32>
    %12 = vector.multi_reduction <add>, %11, %cst_7 [1] : vector<1x2x8x128xf32> to vector<1x8x128xf32>
    %13 = arith.addf %10, %12 : vector<1x8x128xf32>
    %c0_8 = arith.constant 0 : index
    %c0_9 = arith.constant 0 : index
    %c0_10 = arith.constant 0 : index
    %14 = vector.load %arg4[%c0_8, %c0_9, %c0_10] : memref<1x8x128xf32, #tpu.memory_space<vmem>>, vector<1x8x128xf32>
    tpu.vector_store %arg4[%c0_8, %c0_9, %c0_10], %13 {strides = array<i32>} : memref<1x8x128xf32, #tpu.memory_space<vmem>>, vector<1x8x128xf32>,
    return
  }
  func.func @transform_0(%arg0: i32, %arg1: i32) -> (i32, i32) {
    %c1_i32 = arith.constant 1 : i32
    %0 = arith.muli %arg0, %c1_i32 : i32
    %1 = arith.addi %0, %arg1 : i32
    %c0_i32 = arith.constant 0 : i32
    %2 = arith.minsi %1, %c0_i32 : i32
    %c0_i32_0 = arith.constant 0 : i32
    %c0_i32_1 = arith.constant 0 : i32
    return %2, %c0_i32_0 : i32, i32
  }
  func.func @transform_1(%arg0: i32, %arg1: i32) -> (i32, i32) {
    %c1_i32 = arith.constant 1 : i32
    %0 = arith.muli %arg0, %c1_i32 : i32
    %1 = arith.addi %0, %arg1 : i32
    %c0_i32 = arith.constant 0 : i32
    %2 = arith.minsi %1, %c0_i32 : i32
    %c0_i32_0 = arith.constant 0 : i32
    %c0_i32_1 = arith.constant 0 : i32
    return %2, %c0_i32_0 : i32, i32
  }
  func.func @transform_2(%arg0: i32, %arg1: i32) -> (i32, i32, i32) {
    %c0_i32 = arith.constant 0 : i32
    %c0_i32_0 = arith.constant 0 : i32
    %c0_i32_1 = arith.constant 0 : i32
    return %arg0, %c0_i32, %c0_i32_0 : i32, i32, i32
  }
}

</mosaic_0001>

<llo_original>
// kernel: tpu_custom_call.1
$region0: #{tpu_custom_call.1}
  #allocation0 [shape = 'u32[]', space=smem, size = 0x4, offset = 0x4, fixed_abs, tag = 'smem constant byte address 0x4 - core index']
  #allocation1 [shape = 'u32[144,128]{1,0:T(1,128)}', space=vmem, size = 0x12000, scoped, tag = 'internal scratch']
  %s0 = inlined_call_operand.hbm [shape: f32[16,128], index: 0, kind: input, shape index: {}]
  %s1 = inlined_call_operand.hbm [shape: f32[16,128], index: 1, kind: input, shape index: {}]
  %s2 = inlined_call_operand.hbm [shape: f32[1,8,128], index: 2, kind: output, shape index: {}]
  %s3 = sld [smem:[#allocation0]]
  $region30: #{tpu_custom_call.1} parent=0
    _
  %s5 = ssub.s32 1, %s3
  %s6 = scalar_select 0, %s5, %s3
  $region1: #{tpu_custom_call.1} parent=0
    #allocation2 [shape = 'u8[8192]{0}', space=vmem, size = 0x2000, scoped, tag = 'input window, operand 0, single buffered']
    #allocation3 [shape = 's32[1]{0}', space=sflag, size = 0x4, scoped, tag = 'scoped memory for tpu_custom_call.1']
    #allocation4 [shape = 's32[1]{0}', space=sflag, size = 0x4, scoped, tag = 'scoped memory for tpu_custom_call.1']
    #allocation5 [shape = 'u8[8192]{0}', space=vmem, size = 0x2000, scoped, tag = 'input window, operand 1, single buffered']
    #allocation6 [shape = 's32[1]{0}', space=sflag, size = 0x4, scoped, tag = 'scoped memory for tpu_custom_call.1']
    #allocation7 [shape = 'u8[4096]{0}', space=vmem, size = 0x1000, scoped, tag = 'output window, operand 0, single buffered']
    %7 = vsyncpa [#allocation3], 0
    %8 = vsyncpa [#allocation6], 0
    %9 = vsyncpa [#allocation4], 0
    // Predicated region
    $region2: #{tpu_custom_call.1} parent=1 // pred_check
      _
    $region3: #{tpu_custom_call.1} parent=1 // pred_check_branch
      %11 = sbr.rel (0) target = $region5
    $region4: #{tpu_custom_call.1} parent=1 // pred_region
      %s12 = sadd.s32 0, 0
      %p13 = scmp.lt.s32.totalorder %s12, 0
      %s14 = scalar_select %p13, %s12, 0
      %s15 = smul.u32 2, %s14
      %s17 = ssub.s32 256, 256
      %18 = vsyncadd [#allocation3], %s17
      %s19 = smul.addr %s15, 128
      %s20 = scalar_lea.hbm %s0, %s19
      %s21 = sshll.u32 [#allocation2], 4
      %s22 = int_to_ptr.vmem [resolvable:$true] %s21
      %27 = dma.hbm_to_vmem [thread:$0]  %s20, 256, %s22, [#allocation3], 128, 128, 8
    $region5: #{tpu_custom_call.1} parent=1 // pred_fallthru
      _
    // Predicated region
    $region6: #{tpu_custom_call.1} parent=1 // pred_check
      _
    $region7: #{tpu_custom_call.1} parent=1 // pred_check_branch
      %29 = sbr.rel (0) target = $region9
    $region8: #{tpu_custom_call.1} parent=1 // pred_region
      %s30 = sadd.s32 0, 0
      %p31 = scmp.lt.s32.totalorder %s30, 0
      %s32 = scalar_select %p31, %s30, 0
      %s33 = smul.u32 2, %s32
      %s35 = ssub.s32 256, 256
      %36 = vsyncadd [#allocation6], %s35
      %s37 = smul.addr %s33, 128
      %s38 = scalar_lea.hbm %s1, %s37
      %s39 = sshll.u32 [#allocation5], 4
      %s40 = int_to_ptr.vmem [resolvable:$true] %s39
      %45 = dma.hbm_to_vmem [thread:$0]  %s38, 256, %s40, [#allocation6], 128, 128, 8
    $region9: #{tpu_custom_call.1} parent=1 // pred_fallthru
      _
    // Predicated region
    $region10: #{tpu_custom_call.1} parent=1 // pred_check
      _
    $region11: #{tpu_custom_call.1} parent=1 // pred_check_branch
      %47 = sbr.rel (0) target = $region13
    $region12: #{tpu_custom_call.1} parent=1 // pred_region
      %48 = dma.done [#allocation3], 256
    $region13: #{tpu_custom_call.1} parent=1 // pred_fallthru
      _
    // Predicated region
    $region14: #{tpu_custom_call.1} parent=1 // pred_check
      _
    $region15: #{tpu_custom_call.1} parent=1 // pred_check_branch
      %50 = sbr.rel (0) target = $region17
    $region16: #{tpu_custom_call.1} parent=1 // pred_region
      %51 = dma.done [#allocation6], 256
    $region17: #{tpu_custom_call.1} parent=1 // pred_fallthru
      _
    %s52 = sadd.s32 0, 0
    %p53 = scmp.lt.s32.totalorder %s52, 0
    %s54 = scalar_select %p53, %s52, 0
    %s55 = smul.u32 2, %s54
    %s56 = sadd.s32 0, 0
    %p57 = scmp.lt.s32.totalorder %s56, 0
    %s58 = scalar_select %p57, %s56, 0
    %s59 = smul.u32 2, %s58
    %p60 = scmp.eq.s32.totalorder 0, 0
    // Predicated region
    $region18: #{tpu_custom_call.1} parent=1 // pred_check
      %p61 = pneg %p60
    $region19: #{tpu_custom_call.1} parent=1 // pred_check_branch
      %63 = sbr.rel (%p61) target = $region21
    $region20: #{tpu_custom_call.1} parent=1 // pred_region
      %64 = vst [vmem:[#allocation7] sm:$0xff] 0.0
    $region21: #{tpu_custom_call.1} parent=1 // pred_fallthru
      _
    %v65 = vld [vmem:[#allocation2] sm:$0xff]
    %v66 = vld [vmem:[#allocation2 + $0x8] sm:$0xff]
    %v67 = vld [vmem:[#allocation5] sm:$0xff]
    %v68 = vld [vmem:[#allocation5 + $0x8] sm:$0xff]
    %v69 = vsub.f32 %v65, %v67
    %v70 = vsub.f32 %v66, %v68
    %v71 = vmul.f32 %v69, %v69
    %v72 = vmul.f32 %v70, %v70
    %v73 = vadd.f32 %v71, 1e-06
    %v74 = vadd.f32 %v72, 1e-06
    %v75 = vrsqrt.pop %v73
    %v76 = vmul.f32 %v73, %v75
    %vm77 = vcmp.eq.f32.partialorder %v73, inf
    %v78 = vsel %vm77, %v73, %v76
    %vm79 = vcmp.eq.f32.partialorder %v73, 0.0
    %v80 = vand.u32 %v73, 2147483648
    %v81 = vsel %vm79, %v80, %v78
    %v82 = vrsqrt.pop %v74
    %v83 = vmul.f32 %v74, %v82
    %vm84 = vcmp.eq.f32.partialorder %v74, inf
    %v85 = vsel %vm84, %v74, %v83
    %vm86 = vcmp.eq.f32.partialorder %v74, 0.0
    %v87 = vand.u32 %v74, 2147483648
    %v88 = vsel %vm86, %v87, %v85
    %v89 = vld [vmem:[#allocation7] sm:$0xff]
    %v90 = vadd.f32 %v81, %v88
    %v91 = vadd.f32 %v89, %v90
    %92 = vst [vmem:[#allocation7] sm:$0xff] %v91
    // Predicated region
    $region22: #{tpu_custom_call.1} parent=1 // pred_check
      _
    $region23: #{tpu_custom_call.1} parent=1 // pred_check_branch
      %94 = sbr.rel (0) target = $region25
    $region24: #{tpu_custom_call.1} parent=1 // pred_region
      %s96 = ssub.s32 128, 128
      %97 = vsyncadd [#allocation4], %s96
      %s99 = sshll.u32 [#allocation7], 4
      %s100 = int_to_ptr.vmem [resolvable:$true] %s99
      %102 = dma.vmem_to_hbm [thread:$0]  %s100, 128, %s2, [#allocation4]
    $region25: #{tpu_custom_call.1} parent=1 // pred_fallthru
      _
    // Predicated region
    $region26: #{tpu_custom_call.1} parent=1 // pred_check
      _
    $region27: #{tpu_custom_call.1} parent=1 // pred_check_branch
      %104 = sbr.rel (0) target = $region29
    $region28: #{tpu_custom_call.1} parent=1 // pred_region
      %105 = dma.done [#allocation4], 128
    $region29: #{tpu_custom_call.1} parent=1 // pred_fallthru
      _
    %106 = vsyncpa [#allocation3], 1
    %107 = vsyncpa [#allocation6], 1
    %108 = vsyncpa [#allocation4], 1

</llo_original>
